<compile_context>
chip_gen: v7x
topology: tpu7x:2x2x1
jax: 0.10.0
libtpu: 0.0.40
codegen_flags: <defaults>
</compile_context>

<pallas_src>
import functools

import jax
import jax.numpy as jnp
from jax.experimental import pallas as pl
from jax.experimental.pallas import tpu as pltpu


_NEG_BIG = -1e30  # bias for padded logit columns -> exp() underflows to 0


def _round_up(n, m):
    return ((n + m - 1) // m) * m


def rnn_seq_kernel(x_ref, h0_ref, w_ref, b_ref, out_ref, hfin_ref, h_carry,
                   *, i_split, h_split):
    """One grid step == one RNN time step.

    x_ref    : (1, Bp, Ip)       current time-step input block
    h0_ref   : (Bp, Hp)          initial hidden (resident, same block every step)
    w_ref    : (Ip+Hp, Hp+Op)    fused [i2h | i2o] weight (resident)
    b_ref    : (1, Hp+Op)        fused bias (resident; padded logit cols = -1e30)
    out_ref  : (1, Bp, Op)       per-step log-softmax output block
    hfin_ref : (Bp, Hp)          final hidden (written on the last step only)
    h_carry  : (Bp, Hp) f32      VMEM scratch carrying the hidden state
    """
    t = pl.program_id(0)

    @pl.when(t == 0)
    def _init():
        h_carry[...] = h0_ref[...]

    x = x_ref[0]          # (Bp, Ip)
    h = h_carry[...]      # (Bp, Hp)

    # Split the fused matmul by weight rows -> no lane-axis concat needed.
    w_in = w_ref[pl.ds(0, i_split), :]          # (Ip, Hp+Op)
    w_hid = w_ref[pl.ds(i_split, h_split), :]   # (Hp, Hp+Op)

    acc = (jnp.dot(x, w_in, preferred_element_type=jnp.float32)
           + jnp.dot(h, w_hid, preferred_element_type=jnp.float32)
           + b_ref[...])                        # (Bp, Hp+Op)

    new_h = acc[:, :h_split]                    # (Bp, Hp)  i2h result
    logits = acc[:, h_split:]                   # (Bp, Op)  i2o result

    # log-softmax along lanes; padded columns hold a -1e30 bias so they never
    # win the max and contribute exp(...) == 0 to the sum.
    m = jnp.max(logits, axis=1, keepdims=True)
    lse = m + jnp.log(jnp.sum(jnp.exp(logits - m), axis=1, keepdims=True))

    out_ref[0] = (logits - lse).astype(out_ref.dtype)
    h_carry[...] = new_h

    @pl.when(t == pl.num_programs(0) - 1)
    def _finalize():
        hfin_ref[...] = new_h.astype(hfin_ref.dtype)


def _fuse_and_pad_params(w_i2h, b_i2h, w_i2o, b_i2o, input_size):
    """Fuse i2h / i2o into one lane-padded weight & bias.

    w_i2h: [I+H, H]  b_i2h: [1, H]   w_i2o: [I+H, O]  b_i2o: [1, O]
    returns (w_fused [Ip+Hp, Hp+Op], b_fused [1, Hp+Op], dims)
    """
    IH, H = w_i2h.shape
    O = w_i2o.shape[1]
    I = input_size
    assert IH == I + H, "weight rows must equal input_size + hidden_size"

    Ip = _round_up(I, 8)
    Hp = _round_up(H, 128)
    Op = _round_up(O, 128)

    def pad2(a, rows, cols, fill=0.0):
        return jnp.pad(a, ((0, rows - a.shape[0]), (0, cols - a.shape[1])),
                       constant_values=fill)

    w_h_in, w_h_hid = w_i2h[:I], w_i2h[I:]
    w_o_in, w_o_hid = w_i2o[:I], w_i2o[I:]

    top = jnp.concatenate([pad2(w_h_in, Ip, Hp), pad2(w_o_in, Ip, Op)], axis=1)
    bot = jnp.concatenate([pad2(w_h_hid, Hp, Hp), pad2(w_o_hid, Hp, Op)], axis=1)
    w_f = jnp.concatenate([top, bot], axis=0).astype(jnp.float32)

    b_f = jnp.concatenate([pad2(b_i2h, 1, Hp, 0.0),
                           pad2(b_i2o, 1, Op, _NEG_BIG)], axis=1).astype(jnp.float32)
    return w_f, b_f, (I, Ip, H, Hp, O, Op)


def rnn_sequence_forward(x_seq, h0, w_i2h, b_i2h, w_i2o, b_i2o):
    """Run the RNN cell over a [T, B, I] sequence inside a single Pallas kernel.

    Returns (log_softmax outputs [T, B, O], final hidden [B, H]).
    """
    T, B, I = x_seq.shape
    H = h0.shape[1]

    w_f, b_f, (I, Ip, H, Hp, O, Op) = _fuse_and_pad_params(
        w_i2h, b_i2h, w_i2o, b_i2o, I)
    Bp = _round_up(B, 8)

    x_p = jnp.pad(x_seq.astype(jnp.float32),
                  ((0, 0), (0, Bp - B), (0, Ip - I)))
    h0_p = jnp.pad(h0.astype(jnp.float32), ((0, Bp - B), (0, Hp - H)))

    kernel = functools.partial(rnn_seq_kernel, i_split=Ip, h_split=Hp)

    grid_spec = pltpu.PrefetchScalarGridSpec(
        num_scalar_prefetch=0,
        grid=(T,),
        in_specs=[
            pl.BlockSpec((1, Bp, Ip), lambda t: (t, 0, 0)),      # x_t per step
            pl.BlockSpec((Bp, Hp), lambda t: (0, 0)),            # h0 (resident)
            pl.BlockSpec((Ip + Hp, Hp + Op), lambda t: (0, 0)),  # fused W (resident)
            pl.BlockSpec((1, Hp + Op), lambda t: (0, 0)),        # fused bias (resident)
        ],
        out_specs=[
            pl.BlockSpec((1, Bp, Op), lambda t: (t, 0, 0)),      # log-softmax per step
            pl.BlockSpec((Bp, Hp), lambda t: (0, 0)),            # final hidden
        ],
        scratch_shapes=[pltpu.VMEM((Bp, Hp), jnp.float32)],      # hidden carry
    )

    out_seq_p, h_fin_p = pl.pallas_call(
        kernel,
        out_shape=(
            jax.ShapeDtypeStruct((T, Bp, Op), jnp.float32),
            jax.ShapeDtypeStruct((Bp, Hp), jnp.float32),
        ),
        grid_spec=grid_spec,
        compiler_params=pltpu.CompilerParams(
            dimension_semantics=("arbitrary",)),  # time is a true dependence chain
    )(x_p, h0_p, w_f, b_f)

    return out_seq_p[:, :B, :O], h_fin_p[:B, :H]


def rnn_forward(inp, hidden, w_i2h, b_i2h, w_i2o, b_i2o):
    """Single RNN cell step -- identical semantics to the PyTorch module.forward."""
    out_seq, new_hidden = rnn_sequence_forward(
        inp[None], hidden, w_i2h, b_i2h, w_i2o, b_i2o)
    return out_seq[0], new_hidden


def init_params(key, input_size, hidden_size, output_size):
    """Deterministic init mimicking nn.Linear default (uniform +/- 1/sqrt(fan_in))."""
    fan_in = input_size + hidden_size
    bound = 1.0 / jnp.sqrt(jnp.float32(fan_in))
    k1, k2, k3, k4 = jax.random.split(key, 4)
    # stored pre-transposed: [fan_in, out]
    w_i2h = jax.random.uniform(k1, (fan_in, hidden_size), jnp.float32, -bound, bound)
    b_i2h = jax.random.uniform(k2, (1, hidden_size), jnp.float32, -bound, bound)
    w_i2o = jax.random.uniform(k3, (fan_in, output_size), jnp.float32, -bound, bound)
    b_i2o = jax.random.uniform(k4, (1, output_size), jnp.float32, -bound, bound)
    return w_i2h, b_i2h, w_i2o, b_i2o


if __name__ == "__main__":
    input_size, hidden_size, output_size = 16, 32, 8
    batch, seq_len = 2, 8

    key = jax.random.PRNGKey(0)
    kp, kx = jax.random.split(key)

    w_i2h, b_i2h, w_i2o, b_i2o = init_params(kp, input_size, hidden_size, output_size)
    x_seq = jax.random.normal(kx, (seq_len, batch, input_size), jnp.float32)
    h0 = jnp.zeros((batch, hidden_size), jnp.float32)  # matches initHidden()

    # Fused multi-step kernel (time recurrence inside one pallas_call).
    out_seq, h_final = rnn_sequence_forward(x_seq, h0, w_i2h, b_i2h, w_i2o, b_i2o)
    # Single-step entry point (module.forward semantics, T=1).
    out_0, h_1 = rnn_forward(x_seq[0], h0, w_i2h, b_i2h, w_i2o, b_i2o)
    jax.block_until_ready((out_seq, h_final, out_0, h_1))

    # Pure-JAX reference (mirrors the PyTorch module applied per step).
    def ref_step(x, h):
        combined = jnp.concatenate([x, h], axis=1)
        new_h = combined @ w_i2h + b_i2h
        logits = combined @ w_i2o + b_i2o
        return jax.nn.log_softmax(logits, axis=1), new_h

    h = h0
    ref_outs = []
    for t in range(seq_len):
        o, h = ref_step(x_seq[t], h)
        ref_outs.append(o)
    ref_out_seq = jnp.stack(ref_outs)

    assert jnp.allclose(out_seq, ref_out_seq, atol=1e-4, rtol=1e-4), "seq output mismatch"
    assert jnp.allclose(h_final, h, atol=1e-4, rtol=1e-4), "final hidden mismatch"
    assert jnp.allclose(out_0, ref_out_seq[0], atol=1e-5, rtol=1e-5), "step output mismatch"
    ref_h1 = jnp.concatenate([x_seq[0], h0], axis=1) @ w_i2h + b_i2h
    assert jnp.allclose(h_1, ref_h1, atol=1e-5, rtol=1e-5), "step hidden mismatch"

    print("KERNEL_OK")
</pallas_src>

<mosaic_0001>
module attributes {stable_mosaic.version = 11 : i64} {
  func.func @rnn_seq_kernel(%arg0: i32, %arg1: memref<1x8x16xf32, #tpu.memory_space<vmem>>, %arg2: memref<8x128xf32, #tpu.memory_space<vmem>>, %arg3: memref<144x256xf32, #tpu.memory_space<vmem>>, %arg4: memref<1x256xf32, #tpu.memory_space<vmem>>, %arg5: memref<1x8x128xf32, #tpu.memory_space<vmem>>, %arg6: memref<8x128xf32, #tpu.memory_space<vmem>>, %arg7: memref<8x128xf32, #tpu.memory_space<vmem>>) attributes {dimension_semantics = [#tpu.dimension_semantics<arbitrary>], iteration_bounds = array<i64: 8>, scalar_prefetch = 0 : i64, scratch_operands = 1 : i64, tpu.core_type = #tpu.core_type<tc>, window_params = [{transform_indices = @transform_0, window_bounds = array<i64: 1, 8, 16>}, {pipeline_mode = #tpu.pipeline_mode<synchronous>, transform_indices = @transform_1, window_bounds = array<i64: 8, 128>}, {pipeline_mode = #tpu.pipeline_mode<synchronous>, transform_indices = @transform_2, window_bounds = array<i64: 144, 256>}, {pipeline_mode = #tpu.pipeline_mode<synchronous>, transform_indices = @transform_3, window_bounds = array<i64: 1, 256>}, {transform_indices = @transform_4, window_bounds = array<i64: 1, 8, 128>}, {pipeline_mode = #tpu.pipeline_mode<synchronous>, transform_indices = @transform_5, window_bounds = array<i64: 8, 128>}]} {
    %c0_i32 = arith.constant 0 : i32
    %0 = arith.cmpi eq, %arg0, %c0_i32 : i32
    %1 = arith.extui %0 : i1 to i32
    %c0_i32_0 = arith.constant 0 : i32
    %2 = arith.cmpi ne, %1, %c0_i32_0 : i32
    scf.if %2 {
      %c0_19 = arith.constant 0 : index
      %c0_20 = arith.constant 0 : index
      %34 = vector.load %arg2[%c0_19, %c0_20] : memref<8x128xf32, #tpu.memory_space<vmem>>, vector<8x128xf32>
      %c0_21 = arith.constant 0 : index
      %c0_22 = arith.constant 0 : index
      %35 = vector.load %arg7[%c0_21, %c0_22] : memref<8x128xf32, #tpu.memory_space<vmem>>, vector<8x128xf32>
      tpu.vector_store %arg7[%c0_21, %c0_22], %34 {strides = array<i32>} : memref<8x128xf32, #tpu.memory_space<vmem>>, vector<8x128xf32>,
    } else {
    }
    %c0 = arith.constant 0 : index
    %c0_1 = arith.constant 0 : index
    %c0_2 = arith.constant 0 : index
    %3 = vector.load %arg1[%c0, %c0_1, %c0_2] : memref<1x8x16xf32, #tpu.memory_space<vmem>>, vector<1x8x16xf32>
    %4 = vector.shape_cast %3 : vector<1x8x16xf32> to vector<8x16xf32>
    %c0_3 = arith.constant 0 : index
    %c0_4 = arith.constant 0 : index
    %5 = vector.load %arg7[%c0_3, %c0_4] : memref<8x128xf32, #tpu.memory_space<vmem>>, vector<8x128xf32>
    %c0_5 = arith.constant 0 : index
    %c0_6 = arith.constant 0 : index
    %6 = vector.load %arg3[%c0_5, %c0_6] : memref<144x256xf32, #tpu.memory_space<vmem>>, vector<16x256xf32>
    %c16 = arith.constant 16 : index
    %c0_7 = arith.constant 0 : index
    %7 = vector.load %arg3[%c16, %c0_7] : memref<144x256xf32, #tpu.memory_space<vmem>>, vector<128x256xf32>
    %cst = arith.constant dense<0.000000e+00> : vector<8x256xf32>
    %8 = tpu.matmul %4, %6, %cst {dimension_numbers = #tpu.dot_dimension_numbers<[1], [0], [0], [1], [0, 0, 1, 1], [], []>} : vector<8x16xf32>, vector<16x256xf32>, vector<8x256xf32> -> vector<8x256xf32>
    %cst_8 = arith.constant dense<0.000000e+00> : vector<8x256xf32>
    %9 = tpu.matmul %5, %7, %cst_8 {dimension_numbers = #tpu.dot_dimension_numbers<[1], [0], [0], [1], [0, 0, 1, 1], [], []>} : vector<8x128xf32>, vector<128x256xf32>, vector<8x256xf32> -> vector<8x256xf32>
    %10 = arith.addf %8, %9 : vector<8x256xf32>
    %c0_9 = arith.constant 0 : index
    %c0_10 = arith.constant 0 : index
    %11 = vector.load %arg4[%c0_9, %c0_10] : memref<1x256xf32, #tpu.memory_space<vmem>>, vector<1x256xf32>
    %12 = vector.broadcast %11 : vector<1x256xf32> to vector<8x256xf32>
    %13 = arith.addf %10, %12 : vector<8x256xf32>
    %14 = vector.extract_strided_slice %13 {offsets = [0, 0], sizes = [8, 128], strides = [1, 1]} : vector<8x256xf32> to vector<8x128xf32>
    %15 = vector.extract_strided_slice %13 {offsets = [0, 128], sizes = [8, 128], strides = [1, 1]} : vector<8x256xf32> to vector<8x128xf32>
    %cst_11 = arith.constant dense<0xFF800000> : vector<8xf32>
    %16 = vector.multi_reduction <maximumf>, %15, %cst_11 [1] : vector<8x128xf32> to vector<8xf32>
    %17 = vector.shape_cast %16 : vector<8xf32> to vector<8x1xf32>
    %18 = vector.broadcast %17 : vector<8x1xf32> to vector<8x128xf32>
    %19 = arith.subf %15, %18 : vector<8x128xf32>
    %20 = math.exp %19 : vector<8x128xf32>
    %cst_12 = arith.constant dense<0.000000e+00> : vector<8xf32>
    %21 = vector.multi_reduction <add>, %20, %cst_12 [1] : vector<8x128xf32> to vector<8xf32>
    %22 = vector.shape_cast %21 : vector<8xf32> to vector<8x1xf32>
    %23 = math.log %22 : vector<8x1xf32>
    %24 = arith.addf %17, %23 : vector<8x1xf32>
    %25 = vector.broadcast %24 : vector<8x1xf32> to vector<8x128xf32>
    %26 = arith.subf %15, %25 : vector<8x128xf32>
    %c0_13 = arith.constant 0 : index
    %c0_14 = arith.constant 0 : index
    %c0_15 = arith.constant 0 : index
    %27 = vector.load %arg5[%c0_13, %c0_14, %c0_15] : memref<1x8x128xf32, #tpu.memory_space<vmem>>, vector<1x8x128xf32>
    %28 = vector.shape_cast %27 : vector<1x8x128xf32> to vector<8x128xf32>
    %29 = vector.shape_cast %26 : vector<8x128xf32> to vector<1x8x128xf32>
    tpu.vector_store %arg5[%c0_13, %c0_14, %c0_15], %29 {strides = array<i32>} : memref<1x8x128xf32, #tpu.memory_space<vmem>>, vector<1x8x128xf32>,
    %c0_16 = arith.constant 0 : index
    %c0_17 = arith.constant 0 : index
    %30 = vector.load %arg7[%c0_16, %c0_17] : memref<8x128xf32, #tpu.memory_space<vmem>>, vector<8x128xf32>
    tpu.vector_store %arg7[%c0_16, %c0_17], %14 {strides = array<i32>} : memref<8x128xf32, #tpu.memory_space<vmem>>, vector<8x128xf32>,
    %c7_i32 = arith.constant 7 : i32
    %31 = arith.cmpi eq, %arg0, %c7_i32 : i32
    %32 = arith.extui %31 : i1 to i32
    %c0_i32_18 = arith.constant 0 : i32
    %33 = arith.cmpi ne, %32, %c0_i32_18 : i32
    scf.if %33 {
      %c0_19 = arith.constant 0 : index
      %c0_20 = arith.constant 0 : index
      %34 = vector.load %arg6[%c0_19, %c0_20] : memref<8x128xf32, #tpu.memory_space<vmem>>, vector<8x128xf32>
      tpu.vector_store %arg6[%c0_19, %c0_20], %14 {strides = array<i32>} : memref<8x128xf32, #tpu.memory_space<vmem>>, vector<8x128xf32>,
    } else {
    }
    return
  }
  func.func @transform_0(%arg0: i32) -> (i32, i32, i32) {
    %c0_i32 = arith.constant 0 : i32
    %c0_i32_0 = arith.constant 0 : i32
    %c0_i32_1 = arith.constant 0 : i32
    return %arg0, %c0_i32, %c0_i32_0 : i32, i32, i32
  }
  func.func @transform_1(%arg0: i32) -> (i32, i32) {
    %c0_i32 = arith.constant 0 : i32
    %c0_i32_0 = arith.constant 0 : i32
    %c0_i32_1 = arith.constant 0 : i32
    return %c0_i32, %c0_i32_0 : i32, i32
  }
  func.func @transform_2(%arg0: i32) -> (i32, i32) {
    %c0_i32 = arith.constant 0 : i32
    %c0_i32_0 = arith.constant 0 : i32
    %c0_i32_1 = arith.constant 0 : i32
    return %c0_i32, %c0_i32_0 : i32, i32
  }
  func.func @transform_3(%arg0: i32) -> (i32, i32) {
    %c0_i32 = arith.constant 0 : i32
    %c0_i32_0 = arith.constant 0 : i32
    %c0_i32_1 = arith.constant 0 : i32
    return %c0_i32, %c0_i32_0 : i32, i32
  }
  func.func @transform_4(%arg0: i32) -> (i32, i32, i32) {
    %c0_i32 = arith.constant 0 : i32
    %c0_i32_0 = arith.constant 0 : i32
    %c0_i32_1 = arith.constant 0 : i32
    return %arg0, %c0_i32, %c0_i32_0 : i32, i32, i32
  }
  func.func @transform_5(%arg0: i32) -> (i32, i32) {
    %c0_i32 = arith.constant 0 : i32
    %c0_i32_0 = arith.constant 0 : i32
    %c0_i32_1 = arith.constant 0 : i32
    return %c0_i32, %c0_i32_0 : i32, i32
  }
}

</mosaic_0001>

<llo_original>
// kernel: tpu_custom_call.1
$region0: #{tpu_custom_call.1}
  #allocation0 [shape = 'u32[]', space=smem, size = 0x4, offset = 0x4, fixed_abs, tag = 'smem constant byte address 0x4 - core index']
  #allocation1 [shape = 'u32[144,128]{1,0:T(1,128)}', space=vmem, size = 0x12000, scoped, tag = 'internal scratch']
  #allocation2 [shape = 'f32[8,128]{1,0:T(8,128)}', space=vmem, size = 0x1000, scoped, tag = 'scratch operand']
  %s0 = inlined_call_operand.hbm [shape: f32[8,8,16], index: 0, kind: input, shape index: {}]
  %s1 = inlined_call_operand.hbm [shape: f32[8,128], index: 1, kind: input, shape index: {}]
  %s2 = inlined_call_operand.hbm [shape: f32[144,256], index: 2, kind: input, shape index: {}]
  %s3 = inlined_call_operand.vmem [shape: f32[1,256], index: 3, kind: input, shape index: {}]
  %s4 = inlined_call_operand.hbm [shape: f32[8,8,128], index: 4, kind: output, shape index: {0}]
  %s5 = inlined_call_operand.hbm [shape: f32[8,128], index: 5, kind: output, shape index: {1}]
  %6 = xla_tuple %s4, %s5
  %s7 = sld [smem:[#allocation0]]
  $region77: #{tpu_custom_call.1} parent=0
    _
  %s9 = ssub.s32 1, %s7
  %s10 = scalar_select 0, %s9, %s7
  $region1: #{tpu_custom_call.1} parent=0
    #allocation3 [shape = 'u8[8192]{0}', space=vmem, size = 0x2000, scoped, tag = 'input window, operand 0']
    #allocation4 [shape = 's32[2]{0}', space=sflag, size = 0x8, scoped, tag = 'scoped memory for tpu_custom_call.1']
    #allocation5 [shape = 's32[2]{0}', space=sflag, size = 0x8, scoped, tag = 'scoped memory for tpu_custom_call.1']
    #allocation6 [shape = 'u8[4096]{0}', space=vmem, size = 0x1000, scoped, tag = 'input window, operand 1, single buffered']
    #allocation7 [shape = 's32[1]{0}', space=sflag, size = 0x4, scoped, tag = 'scoped memory for tpu_custom_call.1']
    #allocation8 [shape = 'u8[147456]{0}', space=vmem, size = 0x24000, scoped, tag = 'input window, operand 2, single buffered']
    #allocation9 [shape = 'u8[8192]{0}', space=vmem, size = 0x2000, scoped, tag = 'output window, operand 0']
    #allocation10 [shape = 'u8[4096]{0}', space=vmem, size = 0x1000, scoped, tag = 'output window, operand 1, single buffered']
    #allocation11 [shape = 's32[1]{0}', space=sflag, size = 0x4, scoped, tag = 'scoped memory for tpu_custom_call.1']
    %11 = vsyncpa [#allocation4], 0
    %s12 = scalar_lea.sflag [#allocation4], 1
    %13 = vsyncpa %s12, 0
    %14 = vsyncpa [#allocation7], 0
    %15 = vsyncpa [#allocation5], 0
    %s16 = scalar_lea.sflag [#allocation5], 1
    %17 = vsyncpa %s16, 0
    %18 = vsyncpa [#allocation11], 0
    loop: start=0, step=1, limit=10
    $region2: #{tpu_custom_call.1} parent=1 // loop_pre_header
      _
    $region3: #{tpu_custom_call.1} parent=1 // loop_header
      %s20 = sphi 0, %s24
      %p21 = scmp.ge.s32.totalorder %s20, 10
      %s30 = sphi 0, %s32
      %s33 = sphi 0, %s30
      %s34 = sphi 0, %s33
      %s50 = sphi 0, %s34
      %s54 = sphi 0, %s54
      %s56 = sphi 0, %s54
      %s57 = sphi 0, %s56
      %s71 = sphi 0, %s57
      %s75 = sphi 0, %s75
      %s77 = sphi 0, %s75
      %s78 = sphi 0, %s77
      %s92 = sphi 0, %s78
      %s96 = sphi 0, %s96
      %s98 = sphi 0, %s96
      %s99 = sphi 0, %s98
      %s113 = sphi 0, %s99
      %s119 = sphi 0, %s121
      %s122 = sphi 0, %s119
      %s123 = sphi 0, %s122
      %s139 = sphi 0, %s123
      %s143 = sphi 0, %s143
      %s145 = sphi 0, %s143
      %s146 = sphi 0, %s145
      %s160 = sphi 0, %s146
    $region4: #{tpu_custom_call.1} parent=1 // loop_header_branch
      %23 = sbr.rel (%p21) target = $region8
    $region5: #{tpu_custom_call.1} parent=1 // loop_body
      %s25 = ssub.s32 %s20, 1
      %s26 = ssub.s32 %s20, 2
      %s27 = sadd.s32 %s20, 1
      %s28 = ssub.s32 %s20, %s27
      %p29 = scmp.eq.s32.totalorder %s28, 0
      %s31 = sadd.s32 %s30, 1
      %s32 = scalar_select %p29, %s30, %s31
      %p35 = pneg %p29
      %p36 = scmp.eq.s32.totalorder %s20, 7
      %p37 = por %p35, %p36
      %p38 = scmp.ne.s32.totalorder %s30, %s33
      %p39 = scmp.eq.s32.totalorder %s20, 0
      %p40 = por %p38, %p39
      %p41 = scmp.ne.s32.totalorder %s30, %s33
      %p42 = scmp.eq.s32.totalorder %s25, 7
      %p43 = por %p41, %p42
      %p44 = scmp.ne.s32.totalorder %s33, %s34
      %p45 = scmp.eq.s32.totalorder %s25, 0
      %p46 = por %p44, %p45
      %p47 = scmp.ne.s32.totalorder %s33, %s34
      %p48 = scmp.eq.s32.totalorder %s26, 7
      %p49 = por %p47, %p48
      %p51 = scmp.ne.s32.totalorder %s34, %s50
      %p52 = scmp.eq.s32.totalorder %s26, 0
      %p53 = por %p51, %p52
      %s55 = sadd.s32 %s54, 1
      %p58 = scmp.eq.s32.totalorder %s20, 7
      %p59 = scmp.ne.s32.totalorder %s54, %s56
      %p60 = scmp.eq.s32.totalorder %s20, 0
      %p61 = por %p59, %p60
      %p62 = scmp.ne.s32.totalorder %s54, %s56
      %p63 = scmp.eq.s32.totalorder %s25, 7
      %p64 = por %p62, %p63
      %p65 = scmp.ne.s32.totalorder %s56, %s57
      %p66 = scmp.eq.s32.totalorder %s25, 0
      %p67 = por %p65, %p66
      %p68 = scmp.ne.s32.totalorder %s56, %s57
      %p69 = scmp.eq.s32.totalorder %s26, 7
      %p70 = por %p68, %p69
      %p72 = scmp.ne.s32.totalorder %s57, %s71
      %p73 = scmp.eq.s32.totalorder %s26, 0
      %p74 = por %p72, %p73
      %s76 = sadd.s32 %s75, 1
      %p79 = scmp.eq.s32.totalorder %s20, 7
      %p80 = scmp.ne.s32.totalorder %s75, %s77
      %p81 = scmp.eq.s32.totalorder %s20, 0
      %p82 = por %p80, %p81
      %p83 = scmp.ne.s32.totalorder %s75, %s77
      %p84 = scmp.eq.s32.totalorder %s25, 7
      %p85 = por %p83, %p84
      %p86 = scmp.ne.s32.totalorder %s77, %s78
      %p87 = scmp.eq.s32.totalorder %s25, 0
      %p88 = por %p86, %p87
      %p89 = scmp.ne.s32.totalorder %s77, %s78
      %p90 = scmp.eq.s32.totalorder %s26, 7
      %p91 = por %p89, %p90
      %p93 = scmp.ne.s32.totalorder %s78, %s92
      %p94 = scmp.eq.s32.totalorder %s26, 0
      %p95 = por %p93, %p94
      %s97 = sadd.s32 %s96, 1
      %p100 = scmp.eq.s32.totalorder %s20, 7
      %p101 = scmp.ne.s32.totalorder %s96, %s98
      %p102 = scmp.eq.s32.totalorder %s20, 0
      %p103 = por %p101, %p102
      %p104 = scmp.ne.s32.totalorder %s96, %s98
      %p105 = scmp.eq.s32.totalorder %s25, 7
      %p106 = por %p104, %p105
      %p107 = scmp.ne.s32.totalorder %s98, %s99
      %p108 = scmp.eq.s32.totalorder %s25, 0
      %p109 = por %p107, %p108
      %p110 = scmp.ne.s32.totalorder %s98, %s99
      %p111 = scmp.eq.s32.totalorder %s26, 7
      %p112 = por %p110, %p111
      %p114 = scmp.ne.s32.totalorder %s99, %s113
      %p115 = scmp.eq.s32.totalorder %s26, 0
      %p116 = por %p114, %p115
      %s117 = ssub.s32 %s20, %s27
      %p118 = scmp.eq.s32.totalorder %s117, 0
      %s120 = sadd.s32 %s119, 1
      %s121 = scalar_select %p118, %s119, %s120
      %p124 = pneg %p118
      %p125 = scmp.eq.s32.totalorder %s20, 7
      %p126 = por %p124, %p125
      %p127 = scmp.ne.s32.totalorder %s119, %s122
      %p128 = scmp.eq.s32.totalorder %s20, 0
      %p129 = por %p127, %p128
      %p130 = scmp.ne.s32.totalorder %s119, %s122
      %p131 = scmp.eq.s32.totalorder %s25, 7
      %p132 = por %p130, %p131
      %p133 = scmp.ne.s32.totalorder %s122, %s123
      %p134 = scmp.eq.s32.totalorder %s25, 0
      %p135 = por %p133, %p134
      %p136 = scmp.ne.s32.totalorder %s122, %s123
      %p137 = scmp.eq.s32.totalorder %s26, 7
      %p138 = por %p136, %p137
      %p140 = scmp.ne.s32.totalorder %s123, %s139
      %p141 = scmp.eq.s32.totalorder %s26, 0
      %p142 = por %p140, %p141
      %s144 = sadd.s32 %s143, 1
      %p147 = scmp.eq.s32.totalorder %s20, 7
      %p148 = scmp.ne.s32.totalorder %s143, %s145
      %p149 = scmp.eq.s32.totalorder %s20, 0
      %p150 = por %p148, %p149
      %p151 = scmp.ne.s32.totalorder %s143, %s145
      %p152 = scmp.eq.s32.totalorder %s25, 7
      %p153 = por %p151, %p152
      %p154 = scmp.ne.s32.totalorder %s145, %s146
      %p155 = scmp.eq.s32.totalorder %s25, 0
      %p156 = por %p154, %p155
      %p157 = scmp.ne.s32.totalorder %s145, %s146
      %p158 = scmp.eq.s32.totalorder %s26, 7
      %p159 = por %p157, %p158
      %p161 = scmp.ne.s32.totalorder %s146, %s160
      %p162 = scmp.eq.s32.totalorder %s26, 0
      %p163 = por %p161, %p162
      %p164 = scmp.le.s32.totalorder 1, %s20
      %p165 = scmp.lt.s32.totalorder %s20, 9
      %p166 = pnand %p164, %p165
      %p167 = pneg %p166
      // Predicated region
      $region9: #{tpu_custom_call.1} parent=5 // pred_check
        _
      $region10: #{tpu_custom_call.1} parent=5 // pred_check_branch
        %169 = sbr.rel (%p166) target = $region12
      $region11: #{tpu_custom_call.1} parent=5 // pred_region
        %s170 = ssub.s32 %s20, 1
        // Predicated region
        $region13: #{tpu_custom_call.1} parent=11 // pred_check
          %p171 = pneg %p67
        $region14: #{tpu_custom_call.1} parent=11 // pred_check_branch
          %173 = sbr.rel (%p171) target = $region16
        $region15: #{tpu_custom_call.1} parent=11 // pred_region
          %s175 = ssub.s32 128, 128
          %176 = vsyncadd [#allocation7], %s175
          %s178 = sshll.u32 [#allocation6], 4
          %s179 = int_to_ptr.vmem [resolvable:$true] %s178
          %181 = dma.hbm_to_vmem [thread:$0]  %s1, 128, %s179, [#allocation7]
        $region16: #{tpu_custom_call.1} parent=11 // pred_fallthru
          _
        // Predicated region
        $region17: #{tpu_custom_call.1} parent=11 // pred_check
          %p182 = pneg %p88
        $region18: #{tpu_custom_call.1} parent=11 // pred_check_branch
          %184 = sbr.rel (%p182) target = $region20
        $region19: #{tpu_custom_call.1} parent=11 // pred_region
          %s186 = ssub.s32 4608, 4608
          %187 = vsyncadd [#allocation7], %s186
          %s188 = sshll.u32 [#allocation8], 4
          %s189 = int_to_ptr.vmem [resolvable:$true] %s188
          %194 = dma.hbm_to_vmem [thread:$0]  %s2, 4608, %s189, [#allocation7], 256, 256, 16
        $region20: #{tpu_custom_call.1} parent=11 // pred_fallthru
          _
        // Predicated region
        $region21: #{tpu_custom_call.1} parent=11 // pred_check
          %p195 = pneg %p109
        $region22: #{tpu_custom_call.1} parent=11 // pred_check_branch
          %197 = sbr.rel (%p195) target = $region24
        $region23: #{tpu_custom_call.1} parent=11 // pred_region
          _
        $region24: #{tpu_custom_call.1} parent=11 // pred_fallthru
          _
      $region12: #{tpu_custom_call.1} parent=5 // pred_fallthru
        _
      %p198 = scmp.lt.s32.totalorder %s20, 8
      // Predicated region
      $region25: #{tpu_custom_call.1} parent=5 // pred_check
        %p199 = pneg %p198
      $region26: #{tpu_custom_call.1} parent=5 // pred_check_branch
        %201 = sbr.rel (%p199) target = $region28
      $region27: #{tpu_custom_call.1} parent=5 // pred_region
        // Predicated region
        $region29: #{tpu_custom_call.1} parent=27 // pred_check
          %p202 = pneg %p40
        $region30: #{tpu_custom_call.1} parent=27 // pred_check_branch
          %204 = sbr.rel (%p202) target = $region32
        $region31: #{tpu_custom_call.1} parent=27 // pred_region
          %s205 = sand.u32 %s30, 1
          %s206 = scalar_lea.sflag [#allocation4], %s205
          %s207 = sand.u32 %s30, 1
          %s208 = smul.addr %s207, 8
          %s209 = scalar_lea.vmem [#allocation3], %s208
          %s211 = ssub.s32 128, 128
          %212 = vsyncadd %s206, %s211
          %s213 = smul.addr %s20, 128
          %s214 = scalar_lea.hbm %s0, %s213
          %s216 = sshll.u32 %s209, 4
          %s217 = int_to_ptr.vmem [resolvable:$true] %s216
          %219 = dma.hbm_to_vmem [thread:$0]  %s214, 128, %s217, %s206
        $region32: #{tpu_custom_call.1} parent=27 // pred_fallthru
          _
      $region28: #{tpu_custom_call.1} parent=5 // pred_fallthru
        _
      %p220 = scmp.le.s32.totalorder 1, %s20
      %p221 = scmp.lt.s32.totalorder %s20, 9
      %p222 = pnand %p220, %p221
      %p223 = pneg %p222
      // Predicated region
      $region33: #{tpu_custom_call.1} parent=5 // pred_check
        _
      $region34: #{tpu_custom_call.1} parent=5 // pred_check_branch
        %225 = sbr.rel (%p222) target = $region36
      $region35: #{tpu_custom_call.1} parent=5 // pred_region
        %s226 = ssub.s32 %s20, 1
        %s227 = sand.u32 %s33, 1
        %s228 = scalar_lea.sflag [#allocation4], %s227
        %s229 = sand.u32 %s33, 1
        %s230 = smul.addr %s229, 8
        %s231 = scalar_lea.vmem [#allocation3], %s230
        // Predicated region
        $region37: #{tpu_custom_call.1} parent=35 // pred_check
          %p232 = pneg %p46
        $region38: #{tpu_custom_call.1} parent=35 // pred_check_branch
          %234 = sbr.rel (%p232) target = $region40
        $region39: #{tpu_custom_call.1} parent=35 // pred_region
          %235 = dma.done %s228, 128
        $region40: #{tpu_custom_call.1} parent=35 // pred_fallthru
          _
        // Predicated region
        $region41: #{tpu_custom_call.1} parent=35 // pred_check
          %p236 = pneg %p67
        $region42: #{tpu_custom_call.1} parent=35 // pred_check_branch
          %238 = sbr.rel (%p236) target = $region44
        $region43: #{tpu_custom_call.1} parent=35 // pred_region
          %239 = dma.done [#allocation7], 128
        $region44: #{tpu_custom_call.1} parent=35 // pred_fallthru
          _
        // Predicated region
        $region45: #{tpu_custom_call.1} parent=35 // pred_check
          %p240 = pneg %p88
        $region46: #{tpu_custom_call.1} parent=35 // pred_check_branch
          %242 = sbr.rel (%p240) target = $region48
        $region47: #{tpu_custom_call.1} parent=35 // pred_region
          %243 = dma.done [#allocation7], 4608
        $region48: #{tpu_custom_call.1} parent=35 // pred_fallthru
          _
        %s244 = sand.u32 %s33, 1
        %s245 = scalar_lea.sflag [#allocation4], %s244
        %s246 = sand.u32 %s33, 1
        %s247 = smul.addr %s246, 8
        %s248 = scalar_lea.vmem [#allocation3], %s247
        %p249 = pneg %p46
        %p250 = pneg %p43
        %p251 = pneg %p67
        %p252 = pneg %p64
        %p253 = pneg %p88
        %p254 = pneg %p85
        %p255 = pneg %p109
        %p256 = pneg %p106
        %p257 = pneg %p135
        %p258 = pneg %p132
        %s259 = sand.u32 %s122, 1
        %s260 = scalar_lea.sflag [#allocation5], %s259
        %s261 = sand.u32 %s122, 1
        %s262 = smul.addr %s261, 8
        %s263 = scalar_lea.vmem [#allocation9], %s262
        %p264 = pneg %p156
        %p265 = pneg %p153
        %p266 = scmp.eq.s32.totalorder %s25, 0
        // Predicated region
        $region49: #{tpu_custom_call.1} parent=35 // pred_check
          %p267 = pneg %p266
        $region50: #{tpu_custom_call.1} parent=35 // pred_check_branch
          %269 = sbr.rel (%p267) target = $region52
        $region51: #{tpu_custom_call.1} parent=35 // pred_region
          %v270 = vld [vmem:[#allocation6] sm:$0xff]
          %271 = vst [vmem:[#allocation2] sm:$0xff] %v270
        $region52: #{tpu_custom_call.1} parent=35 // pred_fallthru
          _
        %v272 = vld [vmem:[%s231] sm:$0xff]
        %v273 = vld [vmem:[#allocation2] sm:$0xff]
        %v274 = vld [vmem:[#allocation8] sm:$0xff]
        %v275 = vld [vmem:[#allocation8 + $0x8] sm:$0xff]
        %v276 = vld [vmem:[#allocation8 + $0x10] sm:$0xff]
        %v277 = vld [vmem:[#allocation8 + $0x18] sm:$0xff]
        %v278 = vld [vmem:[#allocation8 + $0x20] sm:$0xff]
        %v279 = vld [vmem:[#allocation8 + $0x28] sm:$0xff]
        %v280 = vld [vmem:[#allocation8 + $0x30] sm:$0xff]
        %v281 = vld [vmem:[#allocation8 + $0x38] sm:$0xff]
        %v282 = vld [vmem:[#allocation8 + $0x40] sm:$0xff]
        %v283 = vld [vmem:[#allocation8 + $0x48] sm:$0xff]
        %v284 = vld [vmem:[#allocation8 + $0x50] sm:$0xff]
        %v285 = vld [vmem:[#allocation8 + $0x58] sm:$0xff]
        %v286 = vld [vmem:[#allocation8 + $0x60] sm:$0xff]
        %v287 = vld [vmem:[#allocation8 + $0x68] sm:$0xff]
        %v288 = vld [vmem:[#allocation8 + $0x70] sm:$0xff]
        %v289 = vld [vmem:[#allocation8 + $0x78] sm:$0xff]
        %v290 = vld [vmem:[#allocation8 + $0x80] sm:$0xff]
        %v291 = vld [vmem:[#allocation8 + $0x88] sm:$0xff]
        %v292 = vld [vmem:[#allocation8 + $0x90] sm:$0xff]
        %v293 = vld [vmem:[#allocation8 + $0x98] sm:$0xff]
        %v294 = vld [vmem:[#allocation8 + $0xa0] sm:$0xff]
        %v295 = vld [vmem:[#allocation8 + $0xa8] sm:$0xff]
        %v296 = vld [vmem:[#allocation8 + $0xb0] sm:$0xff]
        %v297 = vld [vmem:[#allocation8 + $0xb8] sm:$0xff]
        %v298 = vld [vmem:[#allocation8 + $0xc0] sm:$0xff]
        %v299 = vld [vmem:[#allocation8 + $0xc8] sm:$0xff]
        %v300 = vld [vmem:[#allocation8 + $0xd0] sm:$0xff]
        %v301 = vld [vmem:[#allocation8 + $0xd8] sm:$0xff]
        %v302 = vld [vmem:[#allocation8 + $0xe0] sm:$0xff]
        %v303 = vld [vmem:[#allocation8 + $0xe8] sm:$0xff]
        %v304 = vld [vmem:[#allocation8 + $0xf0] sm:$0xff]
        %v305 = vld [vmem:[#allocation8 + $0xf8] sm:$0xff]
        %v306 = vld [vmem:[#allocation8 + $0x100] sm:$0xff]
        %v307 = vld [vmem:[#allocation8 + $0x108] sm:$0xff]
        %v308 = vld [vmem:[#allocation8 + $0x110] sm:$0xff]
        %v309 = vld [vmem:[#allocation8 + $0x118] sm:$0xff]
        %310 = vmatprep.subr.mxu0 %v279
        %311 = vmatpush1.msra.mxu0 %v278
        %312 = vmatprep.subr.mxu0 %v281
        %313 = vmatpush1.msra.mxu0 %v280
        %314 = vmatprep.subr.mxu0 %v283
        %315 = vmatpush1.msra.mxu0 %v282
        %316 = vmatprep.subr.mxu0 %v285
        %317 = vmatpush1.msra.mxu0 %v284
        %318 = vmatprep.subr.mxu0 %v287
        %319 = vmatpush1.msra.mxu0 %v286
        %320 = vmatprep.subr.mxu0 %v289
        %321 = vmatpush1.msra.mxu0 %v288
        %322 = vmatprep.subr.mxu0 %v291
        %323 = vmatpush1.msra.mxu0 %v290
        %324 = vmatprep.subr.mxu0 %v293
        %325 = vmatpush1.msra.mxu0 %v292
        %326 = vmatprep.subr.mxu0 %v295
        %327 = vmatpush1.msra.mxu0 %v294
        %328 = vmatprep.subr.mxu0 %v297
        %329 = vmatpush1.msra.mxu0 %v296
        %330 = vmatprep.subr.mxu0 %v299
        %331 = vmatpush1.msra.mxu0 %v298
        %332 = vmatprep.subr.mxu0 %v301
        %333 = vmatpush1.msra.mxu0 %v300
        %334 = vmatprep.subr.mxu0 %v303
        %335 = vmatpush1.msra.mxu0 %v302
        %336 = vmatprep.subr.mxu0 %v305
        %337 = vmatpush1.msra.mxu0 %v304
        %338 = vmatprep.subr.mxu0 %v307
        %339 = vmatpush1.msra.mxu0 %v306
        %340 = vmatprep.subr.mxu0 %v309
        %341 = vmatpush1.msra.mxu0 %v308
        %342 = vmatprep.subr.mxu0 0.0
        %343 = vmatpush1.msra.mxu0 0.0
        %344 = vmatprep.subr.mxu0 0.0
        %345 = vmatpush1.msra.mxu0 0.0
        %346 = vmatprep.subr.mxu0 0.0
        %347 = vmatpush1.msra.mxu0 0.0
        %348 = vmatprep.subr.mxu0 0.0
        %349 = vmatpush1.msra.mxu0 0.0
        %350 = vmatprep.subr.mxu0 0.0
        %351 = vmatpush1.msra.mxu0 0.0
        %352 = vmatprep.subr.mxu0 0.0
        %353 = vmatpush1.msra.mxu0 0.0
        %354 = vmatprep.subr.mxu0 0.0
        %355 = vmatpush1.msra.mxu0 0.0
        %356 = vmatprep.subr.mxu0 0.0
        %357 = vmatpush1.msra.mxu0 0.0
        %358 = vmatprep.subr.mxu0 0.0
        %359 = vmatpush1.msra.mxu0 0.0
        %360 = vmatprep.subr.mxu0 0.0
        %361 = vmatpush1.msra.mxu0 0.0
        %362 = vmatprep.subr.mxu0 0.0
        %363 = vmatpush1.msra.mxu0 0.0
        %364 = vmatprep.subr.mxu0 0.0
        %365 = vmatpush1.msra.mxu0 0.0
        %366 = vmatprep.subr.mxu0 0.0
        %367 = vmatpush1.msra.mxu0 0.0
        %368 = vmatprep.subr.mxu0 0.0
        %369 = vmatpush1.msra.mxu0 0.0
        %370 = vmatprep.subr.mxu0 0.0
        %371 = vmatpush1.msra.mxu0 0.0
        %372 = vmatprep.subr.mxu0 0.0
        %373 = vmatpush1.msra.mxu0 0.0
        %374 = vmatprep.mubr.f32.mxu0 0.0
        %375 = vmatmul.mubr.f32.gmra.mrb[0].mxu0 %v273
        %v376 = vpop.f32.mrb[0].mxu0
        %v377 = vadd.f32 0.0, %v376
        %v378 = vpop.f32.mrb[0].mxu0
        %v379 = vadd.f32 0.0, %v378
        %380 = vdwg.mxu0
        %vm381 = vcmask 130048
        %v383 = vsel %vm381, %v272, 0
        %385 = vmatprep.subr.mxu0 %v275
        %386 = vmatpush1.msra.mxu0 %v274
        %387 = vmatprep.subr.mxu0 %v277
        %388 = vmatpush1.msra.mxu0 %v276
        %389 = vmatprep.subr.mxu0 0.0
        %390 = vmatpush1.msra.mxu0 0.0
        %391 = vmatprep.subr.mxu0 0.0
        %392 = vmatpush1.msra.mxu0 0.0
        %393 = vmatprep.subr.mxu0 0.0
        %394 = vmatpush1.msra.mxu0 0.0
        %395 = vmatprep.subr.mxu0 0.0
        %396 = vmatpush1.msra.mxu0 0.0
        %397 = vmatprep.subr.mxu0 0.0
        %398 = vmatpush1.msra.mxu0 0.0
        %399 = vmatprep.subr.mxu0 0.0
        %400 = vmatpush1.msra.mxu0 0.0
        %401 = vmatprep.subr.mxu0 0.0
        %402 = vmatpush1.msra.mxu0 0.0
        %403 = vmatprep.subr.mxu0 0.0
        %404 = vmatpush1.msra.mxu0 0.0
        %405 = vmatprep.subr.mxu0 0.0
        %406 = vmatpush1.msra.mxu0 0.0
        %407 = vmatprep.subr.mxu0 0.0
        %408 = vmatpush1.msra.mxu0 0.0
        %409 = vmatprep.subr.mxu0 0.0
        %410 = vmatpush1.msra.mxu0 0.0
        %411 = vmatprep.subr.mxu0 0.0
        %412 = vmatpush1.msra.mxu0 0.0
        %413 = vmatprep.subr.mxu0 0.0
        %414 = vmatpush1.msra.mxu0 0.0
        %415 = vmatprep.subr.mxu0 0.0
        %416 = vmatpush1.msra.mxu0 0.0
        %417 = vmatprep.subr.mxu0 0.0
        %418 = vmatpush1.msra.mxu0 0.0
        %419 = vmatprep.subr.mxu0 0.0
        %420 = vmatpush1.msra.mxu0 0.0
        %421 = vmatprep.subr.mxu0 0.0
        %422 = vmatpush1.msra.mxu0 0.0
        %423 = vmatprep.subr.mxu0 0.0
        %424 = vmatpush1.msra.mxu0 0.0
        %425 = vmatprep.subr.mxu0 0.0
        %426 = vmatpush1.msra.mxu0 0.0
        %427 = vmatprep.subr.mxu0 0.0
        %428 = vmatpush1.msra.mxu0 0.0
        %429 = vmatprep.subr.mxu0 0.0
        %430 = vmatpush1.msra.mxu0 0.0
        %431 = vmatprep.subr.mxu0 0.0
        %432 = vmatpush1.msra.mxu0 0.0
        %433 = vmatprep.subr.mxu0 0.0
        %434 = vmatpush1.msra.mxu0 0.0
        %435 = vmatprep.subr.mxu0 0.0
        %436 = vmatpush1.msra.mxu0 0.0
        %437 = vmatprep.subr.mxu0 0.0
        %438 = vmatpush1.msra.mxu0 0.0
        %439 = vmatprep.subr.mxu0 0.0
        %440 = vmatpush1.msra.mxu0 0.0
        %441 = vmatprep.subr.mxu0 0.0
        %442 = vmatpush1.msra.mxu0 0.0
        %443 = vmatprep.subr.mxu0 0.0
        %444 = vmatpush1.msra.mxu0 0.0
        %445 = vmatprep.subr.mxu0 0.0
        %446 = vmatpush1.msra.mxu0 0.0
        %447 = vmatprep.subr.mxu0 0.0
        %448 = vmatpush1.msra.mxu0 0.0
        %449 = vmatprep.mubr.f32.mxu0 0.0
        %450 = vmatmul.mubr.f32.gmra.mrb[0].mxu0 %v383
        %v451 = vpop.f32.mrb[0].mxu0
        %v452 = vadd.f32 %v377, %v451
        %v453 = vpop.f32.mrb[0].mxu0
        %v454 = vadd.f32 %v379, %v453
        %455 = vdwg.mxu0
        %v456 = vld [vmem:[%s3] sm:$0x3]
        %v458 = vlaneseq
        %v459 = vshrl.u32 %v458, 7
        %v460 = vsub.s32 0, %v459
        %v461 = vrot.slane %v456, %v460
        %v462 = vlaneseq
        %v463 = vshrl.u32 %v462, 7
        %v464 = vsub.s32 1, %v463
        %v465 = vrot.slane %v456, %v464
        %v468 = vadd.f32 %v452, %v461
        %v469 = vadd.f32 %v454, %v465
        %470 = vmax.xlane.f32.xlu0 %v469
        %v471 = vpop.xlane.xlu0 %470
        %v472 = vsub.f32 %v469, %v471
        %v473 = vmul.f32 %v472, 1.442695
        %v474 = vpow.pop %v473
        %475 = vadd.xlane.f32.xlu0 %v474
        %v476 = vpop.xlane.xlu0 %475
        %v477 = vlog2.pop %v476
        %v478 = vmul.f32 %v477, 0.6931472
        %v479 = vadd.f32 %v471, %v478
        %v480 = vsub.f32 %v469, %v479
        %481 = vst [vmem:[%s263] sm:$0xff] %v480
        %482 = vst [vmem:[#allocation2] sm:$0xff] %v468
        %p483 = scmp.eq.s32.totalorder %s25, 7
        // Predicated region
        $region53: #{tpu_custom_call.1} parent=35 // pred_check
          %p484 = pneg %p483
        $region54: #{tpu_custom_call.1} parent=35 // pred_check_branch
          %486 = sbr.rel (%p484) target = $region56
        $region55: #{tpu_custom_call.1} parent=35 // pred_region
          %487 = vst [vmem:[#allocation10] sm:$0xff] %v468
        $region56: #{tpu_custom_call.1} parent=35 // pred_fallthru
          _
        %s488 = sand.u32 %s122, 1
        %s489 = scalar_lea.sflag [#allocation5], %s488
        %s490 = sand.u32 %s122, 1
        %s491 = smul.addr %s490, 8
        %s492 = scalar_lea.vmem [#allocation9], %s491
        // Predicated region
        $region57: #{tpu_custom_call.1} parent=35 // pred_check
          %p493 = pneg %p132
        $region58: #{tpu_custom_call.1} parent=35 // pred_check_branch
          %495 = sbr.rel (%p493) target = $region60
        $region59: #{tpu_custom_call.1} parent=35 // pred_region
          %s497 = ssub.s32 128, 128
          %498 = vsyncadd %s489, %s497
          %s499 = smul.addr %s25, 128
          %s500 = scalar_lea.hbm %s4, %s499
          %s502 = sshll.u32 %s492, 4
          %s503 = int_to_ptr.vmem [resolvable:$true] %s502
          %505 = dma.vmem_to_hbm [thread:$0]  %s503, 128, %s500, %s489
        $region60: #{tpu_custom_call.1} parent=35 // pred_fallthru
          _
        // Predicated region
        $region61: #{tpu_custom_call.1} parent=35 // pred_check
          %p506 = pneg %p153
        $region62: #{tpu_custom_call.1} parent=35 // pred_check_branch
          %508 = sbr.rel (%p506) target = $region64
        $region63: #{tpu_custom_call.1} parent=35 // pred_region
          %s510 = ssub.s32 128, 128
          %511 = vsyncadd [#allocation11], %s510
          %s513 = sshll.u32 [#allocation10], 4
          %s514 = int_to_ptr.vmem [resolvable:$true] %s513
          %516 = dma.vmem_to_hbm [thread:$0]  %s514, 128, %s5, [#allocation11]
        $region64: #{tpu_custom_call.1} parent=35 // pred_fallthru
          _
        // Predicated region
        $region65: #{tpu_custom_call.1} parent=35 // pred_check
          %p517 = pneg %p153
        $region66: #{tpu_custom_call.1} parent=35 // pred_check_branch
          %519 = sbr.rel (%p517) target = $region68
        $region67: #{tpu_custom_call.1} parent=35 // pred_region
          %520 = dma.done [#allocation11], 128
        $region68: #{tpu_custom_call.1} parent=35 // pred_fallthru
          _
      $region36: #{tpu_custom_call.1} parent=5 // pred_fallthru
        _
      %p521 = scmp.le.s32.totalorder 2, %s20
      // Predicated region
      $region69: #{tpu_custom_call.1} parent=5 // pred_check
        %p522 = pneg %p521
      $region70: #{tpu_custom_call.1} parent=5 // pred_check_branch
        %524 = sbr.rel (%p522) target = $region72
      $region71: #{tpu_custom_call.1} parent=5 // pred_region
        %s525 = ssub.s32 %s20, 2
        // Predicated region
        $region73: #{tpu_custom_call.1} parent=71 // pred_check
          %p526 = pneg %p138
        $region74: #{tpu_custom_call.1} parent=71 // pred_check_branch
          %528 = sbr.rel (%p526) target = $region76
        $region75: #{tpu_custom_call.1} parent=71 // pred_region
          %s529 = sand.u32 %s123, 1
          %s530 = scalar_lea.sflag [#allocation5], %s529
          %s531 = sand.u32 %s123, 1
          %s532 = smul.addr %s531, 8
          %s533 = scalar_lea.vmem [#allocation9], %s532
          %534 = dma.done %s530, 128
        $region76: #{tpu_custom_call.1} parent=71 // pred_fallthru
          _
      $region72: #{tpu_custom_call.1} parent=5 // pred_fallthru
        _
    $region6: #{tpu_custom_call.1} parent=1 // loop_footer
      %s24 = sadd.s32 1, %s20
    $region7: #{tpu_custom_call.1} parent=1 // loop_footer_branch
      %19 = sbr.rel target = $region3
    $region8: #{tpu_custom_call.1} parent=1 // loop_exit
      _
    %535 = vsyncpa [#allocation4], 1
    %s536 = scalar_lea.sflag [#allocation4], 1
    %537 = vsyncpa %s536, 1
    %538 = vsyncpa [#allocation7], 1
    %539 = vsyncpa [#allocation5], 1
    %s540 = scalar_lea.sflag [#allocation5], 1
    %541 = vsyncpa %s540, 1
    %542 = vsyncpa [#allocation11], 1

</llo_original>
